<compile_context>
chip_gen: v7x
topology: tpu7x:2x2x1
jax: 0.10.0
libtpu: 0.0.40
codegen_flags: <defaults>
</compile_context>

<pallas_src>
import jax
import jax.numpy as jnp
from jax.experimental import pallas as pl
from jax.experimental.pallas import tpu as pltpu


# --------------------------------------------------------------------------- #
# Kernel: one (TILE_N, C) logits block per grid step.
# --------------------------------------------------------------------------- #
def _wce2_kernel(meta_ref, logits_ref, loss_ref):
    # Upcast once in VMEM; inputs may be bf16 to halve HBM traffic (mem-bound).
    # Keep the math in f32 (v5e has no bf16 VPU/EUP; exact on v6e/v7x too).
    x = logits_ref[...].astype(jnp.float32)                  # (TN, C)
    tn, c = x.shape

    tgt = meta_ref[:, 0:1]                                   # (TN,1) int32, -1 => no target
    zcol = meta_ref[:, 1:2]                                  # (TN,1) int32, -1 => nothing to zero
    valid = meta_ref[:, 2:3] > 0                             # (TN,1) bool (pad/ignored rows False)

    col = jax.lax.broadcasted_iota(jnp.int32, (tn, c), 1)

    # One fused select handles both (a) zeroing the confusingly-similar
    # identity's logit and (b) clearing the unspecified data in ragged /
    # padded rows (valid == 0), so no Inf/NaN can leak through the exp.
    x = jnp.where(valid & (col != zcol), x, 0.0)

    # Fused log_softmax + target gather: loss_i = logsumexp(x_i) - x_i[tgt_i]
    row_max = jnp.max(x, axis=1, keepdims=True)              # XLU
    sum_exp = jnp.sum(jnp.exp(x - row_max), axis=1, keepdims=True)
    lse = row_max + jnp.log(sum_exp)
    tgt_logit = jnp.sum(jnp.where(col == tgt, x, 0.0), axis=1, keepdims=True)

    per_row = (lse - tgt_logit) * valid.astype(jnp.float32)  # (TN, 1); 0 for ignored/pad rows

    # Per-tile partial sum, stored as a lane-dense (8,128) splat -> unmasked
    # stores, and the follow-up XLA reduction is over grid_n values only.
    tile_sum = jnp.sum(per_row, axis=0, keepdims=True)       # (1, 1)
    loss_ref[...] = jnp.broadcast_to(tile_sum, loss_ref.shape).astype(loss_ref.dtype)


# --------------------------------------------------------------------------- #
# Wrapper
# --------------------------------------------------------------------------- #
def _round_up(x, m):
    return (x + m - 1) // m * m


def _cdiv(a, b):
    return (a + b - 1) // b


_ROW_ALIGN = 32  # safe sublane multiple for f32 (8,·), bf16 (16,·) and int8 (32,·)


def _choose_tile_n(n, c, itemsize, budget_bytes=4 << 20, row_cap=2048):
    """Rows per tile.

    Target a ~1-4 MiB logits block (measured tile sweep: 85%+ of HBM roofline)
    while 2x double buffering + the in-kernel f32 upcast temp stays well inside
    every generation's scoped-VMEM default (v5e 16 MiB, v6e/v7x 32 MiB).
    """
    rows = max(_ROW_ALIGN,
               (budget_bytes // max(c * itemsize, 1)) // _ROW_ALIGN * _ROW_ALIGN)
    rows = min(rows, row_cap)
    # v7x megacore: make sure the "parallel" batch grid yields >= 2 tiles when
    # there is enough work, so both TensorCores get a share (no-op on v5e/v6e).
    if n >= 2 * _ROW_ALIGN:
        rows = min(rows, _round_up(_cdiv(n, 2), _ROW_ALIGN))
    # never use a tile larger than the (row-aligned) batch itself
    rows = min(rows, _round_up(n, _ROW_ALIGN))
    return rows


def weighted_cross_entropy2(logits, label, max_val, max_ind, *, num_pid,
                            threshold=0.75, rand=True, rand_th=None, rand_u=0.0):
    """Functional forward of WeightedCrossEntropy2 -> scalar loss.

    `rand_u` stands in for Python's random.random() in the original forward
    (one uniform scalar per call), passed explicitly so the op is deterministic.
    Logits may be f32 or bf16; bf16 halves the dominant HBM traffic.
    """
    rand_th = threshold if rand_th is None else rand_th
    n, c = logits.shape
    label = label.astype(jnp.int32)

    # ---- O(N) scalar preprocessing in plain JAX (hoisted out of the kernel) ----
    mask_labeled = label < num_pid
    clamped = jnp.minimum(label, num_pid - 1)
    val = max_val[clamped]
    ind = max_ind[clamped].astype(jnp.int32)
    if rand:
        sim_ignore = (val > rand_u) & (val > rand_th)
    else:
        sim_ignore = val > threshold
    ignore = sim_ignore & mask_labeled

    valid = label != num_pid                                  # nll ignore_index
    zcol = jnp.where(ignore, ind, -1).astype(jnp.int32)       # column to zero, or -1
    tgt = jnp.where(valid, label, -1).astype(jnp.int32)       # gather column, or -1

    # ---- tiling: logits stay UNPADDED in HBM; only the tiny side array pads ----
    itemsize = jnp.dtype(logits.dtype).itemsize
    tile_n = _choose_tile_n(n, c, itemsize)
    grid_n = _cdiv(n, tile_n)
    n_pad = grid_n * tile_n

    # Pack tgt / zcol / valid into ONE (n_pad, 3) int32 array -> 1 narrow DMA
    # per tile instead of 3.  Pad value -1: tgt=-1 (no match), zcol=-1 (no
    # zeroing), valid<=0 (row masked out).
    meta = jnp.stack([tgt, zcol, valid.astype(jnp.int32)], axis=1)        # (n, 3)
    meta = jnp.pad(meta, ((0, n_pad - n), (0, 0)), constant_values=-1)    # (n_pad, 3)

    out = pl.pallas_call(
        _wce2_kernel,
        out_shape=jax.ShapeDtypeStruct((grid_n * 8, 128), jnp.float32),
        grid=(grid_n,),
        in_specs=[
            pl.BlockSpec((tile_n, 3), lambda i: (i, 0)),
            # class-axis block == full array dim C (legal even when C % 128 != 0);
            # the ragged last batch tile is masked in-kernel via `valid`.
            pl.BlockSpec((tile_n, c), lambda i: (i, 0)),
        ],
        out_specs=pl.BlockSpec((8, 128), lambda i: (i, 0)),
        compiler_params=pltpu.CompilerParams(
            dimension_semantics=("parallel",)),
        cost_estimate=pl.CostEstimate(
            flops=7 * n * c,
            transcendentals=n * c,
            bytes_accessed=n * c * itemsize + n_pad * 3 * 4 + grid_n * 8 * 128 * 4),
    )(meta, logits)

    # ---- tiny O(grid_n) / O(N) finish in XLA ----
    per_tile = out.reshape(grid_n, 8, 128)[:, 0, 0]
    # Matches PyTorch nll_loss mean-over-ignored behavior (0/0 -> NaN if every
    # row has label == num_pid).
    return jnp.sum(per_tile) / jnp.sum(valid.astype(jnp.float32))


# --------------------------------------------------------------------------- #
# Pure-JAX reference mirroring the PyTorch forward
# --------------------------------------------------------------------------- #
def weighted_cross_entropy2_ref(logits, label, max_val, max_ind, *, num_pid,
                                threshold=0.75, rand=True, rand_th=None, rand_u=0.0):
    rand_th = threshold if rand_th is None else rand_th
    label = label.astype(jnp.int32)
    mask_labeled = label < num_pid
    clamped = jnp.minimum(label, num_pid - 1)
    val = max_val[clamped]
    ind = max_ind[clamped]
    if rand:
        sim_ignore = (val > rand_u) & (val > rand_th)
    else:
        sim_ignore = val > threshold
    ignore = sim_ignore & mask_labeled

    n, c = logits.shape
    col = jnp.arange(c)[None, :]
    zero_mask = ignore[:, None] & (col == ind[:, None])
    mod = jnp.where(zero_mask, 0.0, logits.astype(jnp.float32))
    logp = jax.nn.log_softmax(mod, axis=1)
    valid = label != num_pid
    safe = jnp.where(valid, label, 0)
    per = -jnp.take_along_axis(logp, safe[:, None], axis=1)[:, 0]
    return jnp.sum(per * valid) / jnp.sum(valid)


if __name__ == "__main__":
    NUM_PID = 120        # small identity LUT for the demo
    N = 72               # proposals (2 grid tiles, ragged last block -> exercises masking)
    C = NUM_PID          # one class logit per identity
    FEAT = 16
    THRESHOLD = 0.75

    key = jax.random.PRNGKey(0)
    k_lut, k_logit, k_label = jax.random.split(key, 3)

    # __init__-time buffers: sim_mat = lut @ lut.T, diag zeroed, row-wise max.
    lut = jax.random.normal(k_lut, (NUM_PID, FEAT), jnp.float32)
    lut = lut / jnp.linalg.norm(lut, axis=1, keepdims=True)
    sim_mat = lut @ lut.T
    sim_mat = sim_mat.at[jnp.arange(NUM_PID), jnp.arange(NUM_PID)].set(0.0)
    max_val = jnp.max(sim_mat, axis=1)
    max_ind = jnp.argmax(sim_mat, axis=1).astype(jnp.int32)

    logits = jax.random.normal(k_logit, (N, C), jnp.float32)
    # labels in [0, NUM_PID]; label == NUM_PID means "unlabeled" -> ignored by the loss
    label = jax.random.randint(k_label, (N,), 0, NUM_PID + 1, dtype=jnp.int32)
    rand_u = 0.35  # deterministic stand-in for random.random() in the torch forward

    # rand=True path (low rand_th so some rows get their similar-id logit zeroed)
    loss_a = weighted_cross_entropy2(
        logits, label, max_val, max_ind, num_pid=NUM_PID,
        threshold=THRESHOLD, rand=True, rand_th=0.35, rand_u=rand_u)
    # rand=False path (static threshold)
    loss_b = weighted_cross_entropy2(
        logits, label, max_val, max_ind, num_pid=NUM_PID,
        threshold=THRESHOLD, rand=False)

    loss_a = jax.block_until_ready(loss_a)
    loss_b = jax.block_until_ready(loss_b)

    ref_a = weighted_cross_entropy2_ref(
        logits, label, max_val, max_ind, num_pid=NUM_PID,
        threshold=THRESHOLD, rand=True, rand_th=0.35, rand_u=rand_u)
    ref_b = weighted_cross_entropy2_ref(
        logits, label, max_val, max_ind, num_pid=NUM_PID,
        threshold=THRESHOLD, rand=False)

    assert jnp.allclose(loss_a, ref_a, atol=1e-5, rtol=1e-5), "loss mismatch (rand=True)"
    assert jnp.allclose(loss_b, ref_b, atol=1e-5, rtol=1e-5), "loss mismatch (rand=False)"

    # bf16 logits path (what a bf16 classifier head would feed): half the HBM
    # bytes; kernel upcasts to f32 internally so only input-quantization error
    # remains.
    loss_bf16 = weighted_cross_entropy2(
        logits.astype(jnp.bfloat16), label, max_val, max_ind, num_pid=NUM_PID,
        threshold=THRESHOLD, rand=False)
    loss_bf16 = jax.block_until_ready(loss_bf16)
    assert jnp.isfinite(loss_bf16), "bf16 loss not finite"
    assert jnp.allclose(loss_bf16, ref_b, atol=1e-1, rtol=1e-1), "loss mismatch (bf16)"

    print("KERNEL_OK")
</pallas_src>

<mosaic_0001>
module attributes {stable_mosaic.version = 11 : i64} {
  func.func @_wce2_kernel(%arg0: i32, %arg1: memref<64x3xi32, #tpu.memory_space<vmem>>, %arg2: memref<64x120xf32, #tpu.memory_space<vmem>>, %arg3: memref<8x128xf32, #tpu.memory_space<vmem>>) attributes {dimension_semantics = [#tpu.dimension_semantics<parallel>], iteration_bounds = array<i64: 2>, scalar_prefetch = 0 : i64, scratch_operands = 0 : i64, tpu.core_type = #tpu.core_type<tc>, window_params = [{transform_indices = @transform_0, window_bounds = array<i64: 64, 3>}, {transform_indices = @transform_1, window_bounds = array<i64: 64, 120>}, {transform_indices = @transform_2, window_bounds = array<i64: 8, 128>}]} {
    %c0 = arith.constant 0 : index
    %c0_0 = arith.constant 0 : index
    %0 = vector.load %arg2[%c0, %c0_0] : memref<64x120xf32, #tpu.memory_space<vmem>>, vector<64x120xf32>
    %c0_1 = arith.constant 0 : index
    %c0_2 = arith.constant 0 : index
    %1 = vector.load %arg1[%c0_1, %c0_2] : memref<64x3xi32, #tpu.memory_space<vmem>>, vector<64x1xi32>
    %c0_3 = arith.constant 0 : index
    %c1 = arith.constant 1 : index
    %2 = vector.load %arg1[%c0_3, %c1] : memref<64x3xi32, #tpu.memory_space<vmem>>, vector<64x1xi32>
    %c0_4 = arith.constant 0 : index
    %c2 = arith.constant 2 : index
    %3 = vector.load %arg1[%c0_4, %c2] : memref<64x3xi32, #tpu.memory_space<vmem>>, vector<64x1xi32>
    %c0_i32 = arith.constant 0 : i32
    %4 = vector.broadcast %c0_i32 : i32 to vector<64x1xi32>
    %5 = arith.cmpi sgt, %3, %4 : vector<64x1xi32>
    %6 = tpu.iota {dimensions = array<i32: 1>} : vector<64x120xi32>
    %7 = vector.broadcast %2 : vector<64x1xi32> to vector<64x120xi32>
    %8 = arith.cmpi ne, %6, %7 : vector<64x120xi32>
    %9 = vector.broadcast %5 : vector<64x1xi1> to vector<64x120xi1>
    %10 = arith.andi %9, %8 : vector<64x120xi1>
    %cst = arith.constant 0.000000e+00 : f32
    %11 = vector.broadcast %cst : f32 to vector<64x120xf32>
    %12 = arith.select %10, %0, %11 : vector<64x120xi1>, vector<64x120xf32>
    %cst_5 = arith.constant dense<0xFF800000> : vector<64xf32>
    %13 = vector.multi_reduction <maximumf>, %12, %cst_5 [1] : vector<64x120xf32> to vector<64xf32>
    %14 = vector.shape_cast %13 : vector<64xf32> to vector<64x1xf32>
    %15 = vector.broadcast %14 : vector<64x1xf32> to vector<64x120xf32>
    %16 = arith.subf %12, %15 : vector<64x120xf32>
    %17 = math.exp %16 : vector<64x120xf32>
    %cst_6 = arith.constant dense<0.000000e+00> : vector<64xf32>
    %18 = vector.multi_reduction <add>, %17, %cst_6 [1] : vector<64x120xf32> to vector<64xf32>
    %19 = vector.shape_cast %18 : vector<64xf32> to vector<64x1xf32>
    %20 = math.log %19 : vector<64x1xf32>
    %21 = arith.addf %14, %20 : vector<64x1xf32>
    %22 = vector.broadcast %1 : vector<64x1xi32> to vector<64x120xi32>
    %23 = arith.cmpi eq, %6, %22 : vector<64x120xi32>
    %cst_7 = arith.constant 0.000000e+00 : f32
    %24 = vector.broadcast %cst_7 : f32 to vector<64x120xf32>
    %25 = arith.select %23, %12, %24 : vector<64x120xi1>, vector<64x120xf32>
    %cst_8 = arith.constant dense<0.000000e+00> : vector<64xf32>
    %26 = vector.multi_reduction <add>, %25, %cst_8 [1] : vector<64x120xf32> to vector<64xf32>
    %27 = vector.shape_cast %26 : vector<64xf32> to vector<64x1xf32>
    %28 = arith.subf %21, %27 : vector<64x1xf32>
    %29 = arith.extui %5 : vector<64x1xi1> to vector<64x1xi32>
    %30 = arith.sitofp %29 : vector<64x1xi32> to vector<64x1xf32>
    %31 = arith.mulf %28, %30 : vector<64x1xf32>
    %cst_9 = arith.constant dense<0.000000e+00> : vector<1xf32>
    %32 = vector.multi_reduction <add>, %31, %cst_9 [0] : vector<64x1xf32> to vector<1xf32>
    %33 = vector.shape_cast %32 : vector<1xf32> to vector<1x1xf32>
    %34 = vector.shape_cast %33 : vector<1x1xf32> to vector<1x1xf32>
    %35 = vector.broadcast %34 : vector<1x1xf32> to vector<8x128xf32>
    %c0_10 = arith.constant 0 : index
    %c0_11 = arith.constant 0 : index
    %36 = vector.load %arg3[%c0_10, %c0_11] : memref<8x128xf32, #tpu.memory_space<vmem>>, vector<8x128xf32>
    tpu.vector_store %arg3[%c0_10, %c0_11], %35 {strides = array<i32>} : memref<8x128xf32, #tpu.memory_space<vmem>>, vector<8x128xf32>,
    return
  }
  func.func @transform_0(%arg0: i32) -> (i32, i32) {
    %c0_i32 = arith.constant 0 : i32
    %c0_i32_0 = arith.constant 0 : i32
    return %arg0, %c0_i32 : i32, i32
  }
  func.func @transform_1(%arg0: i32) -> (i32, i32) {
    %c0_i32 = arith.constant 0 : i32
    %c0_i32_0 = arith.constant 0 : i32
    return %arg0, %c0_i32 : i32, i32
  }
  func.func @transform_2(%arg0: i32) -> (i32, i32) {
    %c0_i32 = arith.constant 0 : i32
    %c0_i32_0 = arith.constant 0 : i32
    return %arg0, %c0_i32 : i32, i32
  }
}

</mosaic_0001>

<llo_original>
// kernel: tpu_custom_call.1
$region0: #{tpu_custom_call.1}
  #allocation0 [shape = 'u32[]', space=smem, size = 0x4, offset = 0x4, fixed_abs, tag = 'smem constant byte address 0x4 - core index']
  #allocation1 [shape = 'u32[144,128]{1,0:T(1,128)}', space=vmem, size = 0x12000, scoped, tag = 'internal scratch']
  %s0 = inlined_call_operand.vmem [shape: s32[128,3], index: 0, kind: input, shape index: {}]
  %s1 = inlined_call_operand.vmem [shape: f32[72,120], index: 1, kind: input, shape index: {}]
  %s2 = inlined_call_operand.hbm [shape: f32[16,128], index: 2, kind: output, shape index: {}]
  %s3 = sld [smem:[#allocation0]]
  $region41: #{tpu_custom_call.1} parent=0
    _
  %s5 = ssub.s32 1, %s3
  %s6 = scalar_select 0, %s5, %s3
  $region1: #{tpu_custom_call.1} parent=0
    #allocation2 [shape = 'u8[8192]{0}', space=vmem, size = 0x2000, scoped, tag = 'output window, operand 0']
    #allocation3 [shape = 's32[2]{0}', space=sflag, size = 0x8, scoped, tag = 'scoped memory for tpu_custom_call.1']
    %7 = vsyncpa [#allocation3], 0
    %s8 = scalar_lea.sflag [#allocation3], 1
    %9 = vsyncpa %s8, 0
    loop: start=0, step=1, limit=4
    $region2: #{tpu_custom_call.1} parent=1 // loop_pre_header
      _
    $region3: #{tpu_custom_call.1} parent=1 // loop_header
      %s11 = sphi 0, %s15
      %p12 = scmp.ge.s32.totalorder %s11, 4
      %s21 = sphi 0, %s23
      %s24 = sphi 0, %s21
      %s25 = sphi 0, %s24
      %s41 = sphi 0, %s25
      %s47 = sphi 0, %s49
      %s50 = sphi 0, %s47
      %s51 = sphi 0, %s50
      %s67 = sphi 0, %s51
      %s73 = sphi 0, %s75
      %s76 = sphi 0, %s73
      %s77 = sphi 0, %s76
      %s93 = sphi 0, %s77
    $region4: #{tpu_custom_call.1} parent=1 // loop_header_branch
      %14 = sbr.rel (%p12) target = $region8
    $region5: #{tpu_custom_call.1} parent=1 // loop_body
      %s16 = ssub.s32 %s11, 1
      %s17 = ssub.s32 %s11, 2
      %s18 = sadd.s32 %s11, 1
      %s19 = ssub.s32 %s11, %s18
      %p20 = scmp.eq.s32.totalorder %s19, 0
      %s22 = sadd.s32 %s21, 1
      %s23 = scalar_select %p20, %s21, %s22
      %p26 = pneg %p20
      %p27 = scmp.eq.s32.totalorder %s11, 1
      %p28 = por %p26, %p27
      %p29 = scmp.ne.s32.totalorder %s21, %s24
      %p30 = scmp.eq.s32.totalorder %s11, 0
      %p31 = por %p29, %p30
      %p32 = scmp.ne.s32.totalorder %s21, %s24
      %p33 = scmp.eq.s32.totalorder %s16, 1
      %p34 = por %p32, %p33
      %p35 = scmp.ne.s32.totalorder %s24, %s25
      %p36 = scmp.eq.s32.totalorder %s16, 0
      %p37 = por %p35, %p36
      %p38 = scmp.ne.s32.totalorder %s24, %s25
      %p39 = scmp.eq.s32.totalorder %s17, 1
      %p40 = por %p38, %p39
      %p42 = scmp.ne.s32.totalorder %s25, %s41
      %p43 = scmp.eq.s32.totalorder %s17, 0
      %p44 = por %p42, %p43
      %s45 = ssub.s32 %s11, %s18
      %p46 = scmp.eq.s32.totalorder %s45, 0
      %s48 = sadd.s32 %s47, 1
      %s49 = scalar_select %p46, %s47, %s48
      %p52 = pneg %p46
      %p53 = scmp.eq.s32.totalorder %s11, 1
      %p54 = por %p52, %p53
      %p55 = scmp.ne.s32.totalorder %s47, %s50
      %p56 = scmp.eq.s32.totalorder %s11, 0
      %p57 = por %p55, %p56
      %p58 = scmp.ne.s32.totalorder %s47, %s50
      %p59 = scmp.eq.s32.totalorder %s16, 1
      %p60 = por %p58, %p59
      %p61 = scmp.ne.s32.totalorder %s50, %s51
      %p62 = scmp.eq.s32.totalorder %s16, 0
      %p63 = por %p61, %p62
      %p64 = scmp.ne.s32.totalorder %s50, %s51
      %p65 = scmp.eq.s32.totalorder %s17, 1
      %p66 = por %p64, %p65
      %p68 = scmp.ne.s32.totalorder %s51, %s67
      %p69 = scmp.eq.s32.totalorder %s17, 0
      %p70 = por %p68, %p69
      %s71 = ssub.s32 %s11, %s18
      %p72 = scmp.eq.s32.totalorder %s71, 0
      %s74 = sadd.s32 %s73, 1
      %s75 = scalar_select %p72, %s73, %s74
      %p78 = pneg %p72
      %p79 = scmp.eq.s32.totalorder %s11, 1
      %p80 = por %p78, %p79
      %p81 = scmp.ne.s32.totalorder %s73, %s76
      %p82 = scmp.eq.s32.totalorder %s11, 0
      %p83 = por %p81, %p82
      %p84 = scmp.ne.s32.totalorder %s73, %s76
      %p85 = scmp.eq.s32.totalorder %s16, 1
      %p86 = por %p84, %p85
      %p87 = scmp.ne.s32.totalorder %s76, %s77
      %p88 = scmp.eq.s32.totalorder %s16, 0
      %p89 = por %p87, %p88
      %p90 = scmp.ne.s32.totalorder %s76, %s77
      %p91 = scmp.eq.s32.totalorder %s17, 1
      %p92 = por %p90, %p91
      %p94 = scmp.ne.s32.totalorder %s77, %s93
      %p95 = scmp.eq.s32.totalorder %s17, 0
      %p96 = por %p94, %p95
      %p97 = scmp.le.s32.totalorder 1, %s11
      %p98 = scmp.lt.s32.totalorder %s11, 3
      %p99 = pnand %p97, %p98
      %p100 = pneg %p99
      // Predicated region
      $region9: #{tpu_custom_call.1} parent=5 // pred_check
        _
      $region10: #{tpu_custom_call.1} parent=5 // pred_check_branch
        %102 = sbr.rel (%p99) target = $region12
      $region11: #{tpu_custom_call.1} parent=5 // pred_region
        %s103 = ssub.s32 %s11, 1
      $region12: #{tpu_custom_call.1} parent=5 // pred_fallthru
        _
      %p104 = scmp.lt.s32.totalorder %s11, 2
      // Predicated region
      $region13: #{tpu_custom_call.1} parent=5 // pred_check
        %p105 = pneg %p104
      $region14: #{tpu_custom_call.1} parent=5 // pred_check_branch
        %107 = sbr.rel (%p105) target = $region16
      $region15: #{tpu_custom_call.1} parent=5 // pred_region
        // Predicated region
        $region17: #{tpu_custom_call.1} parent=15 // pred_check
          %p108 = pneg %p31
        $region18: #{tpu_custom_call.1} parent=15 // pred_check_branch
          %110 = sbr.rel (%p108) target = $region20
        $region19: #{tpu_custom_call.1} parent=15 // pred_region
          %s111 = smul.u32 8, %s11
          %p112 = scmp.lt.s32.totalorder %s111, 15
          %s113 = scalar_select %p112, %s111, 15
          %s114 = smul.addr %s113, 8
          %s115 = scalar_lea.vmem %s0, %s114
          %s116 = smul.u32 8, %s11
        $region20: #{tpu_custom_call.1} parent=15 // pred_fallthru
          _
        // Predicated region
        $region21: #{tpu_custom_call.1} parent=15 // pred_check
          %p117 = pneg %p57
        $region22: #{tpu_custom_call.1} parent=15 // pred_check_branch
          %119 = sbr.rel (%p117) target = $region24
        $region23: #{tpu_custom_call.1} parent=15 // pred_region
          %s120 = smul.u32 8, %s11
          %s121 = ssub.s32 9, %s120
          %p122 = scmp.lt.s32.totalorder %s121, 8
          %s123 = scalar_select %p122, %s121, 8
          %s124 = smul.u32 128, %s123
          %p125 = scmp.lt.s32.totalorder %s120, 8
          %s126 = scalar_select %p125, %s120, 8
          %s127 = smul.addr %s126, 8
          %s128 = scalar_lea.vmem %s1, %s127
          %s129 = smul.u32 8, %s11
          %s130 = ssub.s32 9, %s129
          %p131 = scmp.lt.s32.totalorder %s130, 8
          %s132 = scalar_select %p131, %s130, 8
          %s133 = smul.u32 128, %s132
        $region24: #{tpu_custom_call.1} parent=15 // pred_fallthru
          _
      $region16: #{tpu_custom_call.1} parent=5 // pred_fallthru
        _
      %p134 = scmp.le.s32.totalorder 1, %s11
      %p135 = scmp.lt.s32.totalorder %s11, 3
      %p136 = pnand %p134, %p135
      %p137 = pneg %p136
      // Predicated region
      $region25: #{tpu_custom_call.1} parent=5 // pred_check
        _
      $region26: #{tpu_custom_call.1} parent=5 // pred_check_branch
        %139 = sbr.rel (%p136) target = $region28
      $region27: #{tpu_custom_call.1} parent=5 // pred_region
        %s140 = ssub.s32 %s11, 1
        %s141 = smul.u32 8, %s16
        %p142 = scmp.lt.s32.totalorder %s141, 15
        %s143 = scalar_select %p142, %s141, 15
        %s144 = smul.addr %s143, 8
        %s145 = scalar_lea.vmem %s0, %s144
        %p146 = pneg %p37
        %p147 = pneg %p34
        %s148 = smul.u32 8, %s16
        %s149 = ssub.s32 9, %s148
        %p150 = scmp.lt.s32.totalorder %s149, 8
        %s151 = scalar_select %p150, %s149, 8
        %s152 = smul.u32 128, %s151
        %p153 = scmp.lt.s32.totalorder %s148, 8
        %s154 = scalar_select %p153, %s148, 8
        %s155 = smul.addr %s154, 8
        %s156 = scalar_lea.vmem %s1, %s155
        %p157 = pneg %p63
        %p158 = pneg %p60
        %p159 = pneg %p89
        %p160 = pneg %p86
        %s161 = sand.u32 %s76, 1
        %s162 = scalar_lea.sflag [#allocation3], %s161
        %s163 = sand.u32 %s76, 1
        %s164 = smul.addr %s163, 8
        %s165 = scalar_lea.vmem [#allocation2], %s164
        %s166 = smul.u32 8, %s16
        %p167 = scmp.lt.s32.totalorder %s166, 15
        %s168 = scalar_select %p167, %s166, 15
        %s169 = smul.addr %s168, 8
        %s170 = scalar_lea.vmem %s0, %s169
        %s171 = smul.u32 8, %s16
        %s172 = smul.u32 8, %s16
        %s173 = ssub.s32 9, %s172
        %p174 = scmp.lt.s32.totalorder %s173, 8
        %s175 = scalar_select %p174, %s173, 8
        %s176 = smul.u32 128, %s175
        %p177 = scmp.lt.s32.totalorder %s172, 8
        %s178 = scalar_select %p177, %s172, 8
        %s179 = smul.addr %s178, 8
        %s180 = scalar_lea.vmem %s1, %s179
        %s181 = smul.u32 8, %s16
        %s182 = ssub.s32 9, %s181
        %p183 = scmp.lt.s32.totalorder %s182, 8
        %s184 = scalar_select %p183, %s182, 8
        %s185 = smul.u32 128, %s184
        %v186 = vld [vmem:[%s180] sm:$0xff]
        %v187 = vld [vmem:[%s180 + $0x8] sm:$0xff]
        %v188 = vld [vmem:[%s180 + $0x10] sm:$0xff]
        %v189 = vld [vmem:[%s180 + $0x18] sm:$0xff]
        %v190 = vld [vmem:[%s180 + $0x20] sm:$0xff]
        %v191 = vld [vmem:[%s180 + $0x28] sm:$0xff]
        %v192 = vld [vmem:[%s180 + $0x30] sm:$0xff]
        %v193 = vld [vmem:[%s180 + $0x38] sm:$0xff]
        %v194 = vld [vmem:[%s170] sm:$0xff]
        %v195 = vld [vmem:[%s170 + $0x8] sm:$0xff]
        %v196 = vld [vmem:[%s170 + $0x10] sm:$0xff]
        %v197 = vld [vmem:[%s170 + $0x18] sm:$0xff]
        %v198 = vld [vmem:[%s170 + $0x20] sm:$0xff]
        %v199 = vld [vmem:[%s170 + $0x28] sm:$0xff]
        %v200 = vld [vmem:[%s170 + $0x30] sm:$0xff]
        %v201 = vld [vmem:[%s170 + $0x38] sm:$0xff]
        %vm202 = vcmp.gt.s32.totalorder %v194, 0
        %vm203 = vcmp.gt.s32.totalorder %v195, 0
        %vm204 = vcmp.gt.s32.totalorder %v196, 0
        %vm205 = vcmp.gt.s32.totalorder %v197, 0
        %vm206 = vcmp.gt.s32.totalorder %v198, 0
        %vm207 = vcmp.gt.s32.totalorder %v199, 0
        %vm208 = vcmp.gt.s32.totalorder %v200, 0
        %vm209 = vcmp.gt.s32.totalorder %v201, 0
        %v210 = vlaneseq
        %v211 = vand.u32 %v210, 127
        %212 = vset.pattern.permute.xlu0 1
        %213 = vperm.xlu0 %212, %v194
        %v214 = vpop.permute.xlu0 %213
        %215 = vset.pattern.permute.xlu0 1
        %216 = vperm.xlu0 %215, %v195
        %v217 = vpop.permute.xlu0 %216
        %218 = vset.pattern.permute.xlu0 1
        %219 = vperm.xlu0 %218, %v196
        %v220 = vpop.permute.xlu0 %219
        %221 = vset.pattern.permute.xlu0 1
        %222 = vperm.xlu0 %221, %v197
        %v223 = vpop.permute.xlu0 %222
        %224 = vset.pattern.permute.xlu0 1
        %225 = vperm.xlu0 %224, %v198
        %v226 = vpop.permute.xlu0 %225
        %227 = vset.pattern.permute.xlu0 1
        %228 = vperm.xlu0 %227, %v199
        %v229 = vpop.permute.xlu0 %228
        %230 = vset.pattern.permute.xlu0 1
        %231 = vperm.xlu0 %230, %v200
        %v232 = vpop.permute.xlu0 %231
        %233 = vset.pattern.permute.xlu0 1
        %234 = vperm.xlu0 %233, %v201
        %v235 = vpop.permute.xlu0 %234
        %vm236 = vcmp.ne.s32.totalorder %v211, %v214
        %vm237 = vcmp.ne.s32.totalorder %v211, %v217
        %vm238 = vcmp.ne.s32.totalorder %v211, %v220
        %vm239 = vcmp.ne.s32.totalorder %v211, %v223
        %vm240 = vcmp.ne.s32.totalorder %v211, %v226
        %vm241 = vcmp.ne.s32.totalorder %v211, %v229
        %vm242 = vcmp.ne.s32.totalorder %v211, %v232
        %vm243 = vcmp.ne.s32.totalorder %v211, %v235
        %v244 = vsel %vm202, 1, 0
        %v245 = vsel %vm203, 1, 0
        %v246 = vsel %vm204, 1, 0
        %v247 = vsel %vm205, 1, 0
        %v248 = vsel %vm206, 1, 0
        %v249 = vsel %vm207, 1, 0
        %v250 = vsel %vm208, 1, 0
        %v251 = vsel %vm209, 1, 0
        %252 = vset.pattern.permute.xlu0 2
        %253 = vperm.xlu0 %252, %v244
        %v254 = vpop.permute.xlu0 %253
        %255 = vset.pattern.permute.xlu0 2
        %256 = vperm.xlu0 %255, %v245
        %v257 = vpop.permute.xlu0 %256
        %258 = vset.pattern.permute.xlu0 2
        %259 = vperm.xlu0 %258, %v246
        %v260 = vpop.permute.xlu0 %259
        %261 = vset.pattern.permute.xlu0 2
        %262 = vperm.xlu0 %261, %v247
        %v263 = vpop.permute.xlu0 %262
        %264 = vset.pattern.permute.xlu0 2
        %265 = vperm.xlu0 %264, %v248
        %v266 = vpop.permute.xlu0 %265
        %267 = vset.pattern.permute.xlu0 2
        %268 = vperm.xlu0 %267, %v249
        %v269 = vpop.permute.xlu0 %268
        %270 = vset.pattern.permute.xlu0 2
        %271 = vperm.xlu0 %270, %v250
        %v272 = vpop.permute.xlu0 %271
        %273 = vset.pattern.permute.xlu0 2
        %274 = vperm.xlu0 %273, %v251
        %v275 = vpop.permute.xlu0 %274
        %vm276 = vcmp.eq.s32.totalorder %v254, 1
        %vm277 = vcmp.eq.s32.totalorder %v257, 1
        %vm278 = vcmp.eq.s32.totalorder %v260, 1
        %vm279 = vcmp.eq.s32.totalorder %v263, 1
        %vm280 = vcmp.eq.s32.totalorder %v266, 1
        %vm281 = vcmp.eq.s32.totalorder %v269, 1
        %vm282 = vcmp.eq.s32.totalorder %v272, 1
        %vm283 = vcmp.eq.s32.totalorder %v275, 1
        %vm284 = vmand %vm276, %vm236
        %vm285 = vmand %vm277, %vm237
        %vm286 = vmand %vm278, %vm238
        %vm287 = vmand %vm279, %vm239
        %vm288 = vmand %vm280, %vm240
        %vm289 = vmand %vm281, %vm241
        %vm290 = vmand %vm282, %vm242
        %vm291 = vmand %vm283, %vm243
        %v292 = vsel %vm284, %v186, 0.0
        %v293 = vsel %vm285, %v187, 0.0
        %v294 = vsel %vm286, %v188, 0.0
        %v295 = vsel %vm287, %v189, 0.0
        %v296 = vsel %vm288, %v190, 0.0
        %v297 = vsel %vm289, %v191, 0.0
        %v298 = vsel %vm290, %v192, 0.0
        %v299 = vsel %vm291, %v193, 0.0
        %vm300 = vcmask 982016
        %v301 = vsel %vm300, %v292, -inf
        %302 = vmax.xlane.f32.xlu0 %v301
        %v303 = vpop.xlane.xlu0 %302
        %v304 = vsel %vm300, %v293, -inf
        %305 = vmax.xlane.f32.xlu0 %v304
        %v306 = vpop.xlane.xlu0 %305
        %v307 = vsel %vm300, %v294, -inf
        %308 = vmax.xlane.f32.xlu0 %v307
        %v309 = vpop.xlane.xlu0 %308
        %v310 = vsel %vm300, %v295, -inf
        %311 = vmax.xlane.f32.xlu0 %v310
        %v312 = vpop.xlane.xlu0 %311
        %v313 = vsel %vm300, %v296, -inf
        %314 = vmax.xlane.f32.xlu0 %v313
        %v315 = vpop.xlane.xlu0 %314
        %v316 = vsel %vm300, %v297, -inf
        %317 = vmax.xlane.f32.xlu0 %v316
        %v318 = vpop.xlane.xlu0 %317
        %v319 = vsel %vm300, %v298, -inf
        %320 = vmax.xlane.f32.xlu0 %v319
        %v321 = vpop.xlane.xlu0 %320
        %v322 = vsel %vm300, %v299, -inf
        %323 = vmax.xlane.f32.xlu0 %v322
        %v324 = vpop.xlane.xlu0 %323
        %v325 = vsub.f32 %v292, %v303
        %v326 = vsub.f32 %v293, %v306
        %v327 = vsub.f32 %v294, %v309
        %v328 = vsub.f32 %v295, %v312
        %v329 = vsub.f32 %v296, %v315
        %v330 = vsub.f32 %v297, %v318
        %v331 = vsub.f32 %v298, %v321
        %v332 = vsub.f32 %v299, %v324
        %v333 = vmul.f32 %v325, 1.442695
        %v334 = vpow.pop %v333
        %v335 = vmul.f32 %v326, 1.442695
        %v336 = vpow.pop %v335
        %v337 = vmul.f32 %v327, 1.442695
        %v338 = vpow.pop %v337
        %v339 = vmul.f32 %v328, 1.442695
        %v340 = vpow.pop %v339
        %v341 = vmul.f32 %v329, 1.442695
        %v342 = vpow.pop %v341
        %v343 = vmul.f32 %v330, 1.442695
        %v344 = vpow.pop %v343
        %v345 = vmul.f32 %v331, 1.442695
        %v346 = vpow.pop %v345
        %v347 = vmul.f32 %v332, 1.442695
        %v348 = vpow.pop %v347
        %v349 = vsel %vm300, %v334, 0.0
        %350 = vadd.xlane.f32.xlu0 %v349
        %v351 = vpop.xlane.xlu0 %350
        %v352 = vsel %vm300, %v336, 0.0
        %353 = vadd.xlane.f32.xlu0 %v352
        %v354 = vpop.xlane.xlu0 %353
        %v355 = vsel %vm300, %v338, 0.0
        %356 = vadd.xlane.f32.xlu0 %v355
        %v357 = vpop.xlane.xlu0 %356
        %v358 = vsel %vm300, %v340, 0.0
        %359 = vadd.xlane.f32.xlu0 %v358
        %v360 = vpop.xlane.xlu0 %359
        %v361 = vsel %vm300, %v342, 0.0
        %362 = vadd.xlane.f32.xlu0 %v361
        %v363 = vpop.xlane.xlu0 %362
        %v364 = vsel %vm300, %v344, 0.0
        %365 = vadd.xlane.f32.xlu0 %v364
        %v366 = vpop.xlane.xlu0 %365
        %v367 = vsel %vm300, %v346, 0.0
        %368 = vadd.xlane.f32.xlu0 %v367
        %v369 = vpop.xlane.xlu0 %368
        %v370 = vsel %vm300, %v348, 0.0
        %371 = vadd.xlane.f32.xlu0 %v370
        %v372 = vpop.xlane.xlu0 %371
        %v373 = vlog2.pop %v351
        %v374 = vmul.f32 %v373, 0.6931472
        %v375 = vlog2.pop %v354
        %v376 = vmul.f32 %v375, 0.6931472
        %v377 = vlog2.pop %v357
        %v378 = vmul.f32 %v377, 0.6931472
        %v379 = vlog2.pop %v360
        %v380 = vmul.f32 %v379, 0.6931472
        %v381 = vlog2.pop %v363
        %v382 = vmul.f32 %v381, 0.6931472
        %v383 = vlog2.pop %v366
        %v384 = vmul.f32 %v383, 0.6931472
        %v385 = vlog2.pop %v369
        %v386 = vmul.f32 %v385, 0.6931472
        %v387 = vlog2.pop %v372
        %v388 = vmul.f32 %v387, 0.6931472
        %v389 = vadd.f32 %v303, %v374
        %v390 = vadd.f32 %v306, %v376
        %v391 = vadd.f32 %v309, %v378
        %v392 = vadd.f32 %v312, %v380
        %v393 = vadd.f32 %v315, %v382
        %v394 = vadd.f32 %v318, %v384
        %v395 = vadd.f32 %v321, %v386
        %v396 = vadd.f32 %v324, %v388
        %397 = vset.pattern.permute.xlu0 0
        %398 = vperm.xlu0 %397, %v194
        %v399 = vpop.permute.xlu0 %398
        %400 = vset.pattern.permute.xlu0 0
        %401 = vperm.xlu0 %400, %v195
        %v402 = vpop.permute.xlu0 %401
        %403 = vset.pattern.permute.xlu0 0
        %404 = vperm.xlu0 %403, %v196
        %v405 = vpop.permute.xlu0 %404
        %406 = vset.pattern.permute.xlu0 0
        %407 = vperm.xlu0 %406, %v197
        %v408 = vpop.permute.xlu0 %407
        %409 = vset.pattern.permute.xlu0 0
        %410 = vperm.xlu0 %409, %v198
        %v411 = vpop.permute.xlu0 %410
        %412 = vset.pattern.permute.xlu0 0
        %413 = vperm.xlu0 %412, %v199
        %v414 = vpop.permute.xlu0 %413
        %415 = vset.pattern.permute.xlu0 0
        %416 = vperm.xlu0 %415, %v200
        %v417 = vpop.permute.xlu0 %416
        %418 = vset.pattern.permute.xlu0 0
        %419 = vperm.xlu0 %418, %v201
        %v420 = vpop.permute.xlu0 %419
        %vm421 = vcmp.eq.s32.totalorder %v211, %v399
        %vm422 = vcmp.eq.s32.totalorder %v211, %v402
        %vm423 = vcmp.eq.s32.totalorder %v211, %v405
        %vm424 = vcmp.eq.s32.totalorder %v211, %v408
        %vm425 = vcmp.eq.s32.totalorder %v211, %v411
        %vm426 = vcmp.eq.s32.totalorder %v211, %v414
        %vm427 = vcmp.eq.s32.totalorder %v211, %v417
        %vm428 = vcmp.eq.s32.totalorder %v211, %v420
        %v429 = vsel %vm421, %v292, 0.0
        %v430 = vsel %vm422, %v293, 0.0
        %v431 = vsel %vm423, %v294, 0.0
        %v432 = vsel %vm424, %v295, 0.0
        %v433 = vsel %vm425, %v296, 0.0
        %v434 = vsel %vm426, %v297, 0.0
        %v435 = vsel %vm427, %v298, 0.0
        %v436 = vsel %vm428, %v299, 0.0
        %v437 = vsel %vm300, %v429, 0.0
        %438 = vadd.xlane.f32.xlu0 %v437
        %v439 = vpop.xlane.xlu0 %438
        %v440 = vsel %vm300, %v430, 0.0
        %441 = vadd.xlane.f32.xlu0 %v440
        %v442 = vpop.xlane.xlu0 %441
        %v443 = vsel %vm300, %v431, 0.0
        %444 = vadd.xlane.f32.xlu0 %v443
        %v445 = vpop.xlane.xlu0 %444
        %v446 = vsel %vm300, %v432, 0.0
        %447 = vadd.xlane.f32.xlu0 %v446
        %v448 = vpop.xlane.xlu0 %447
        %v449 = vsel %vm300, %v433, 0.0
        %450 = vadd.xlane.f32.xlu0 %v449
        %v451 = vpop.xlane.xlu0 %450
        %v452 = vsel %vm300, %v434, 0.0
        %453 = vadd.xlane.f32.xlu0 %v452
        %v454 = vpop.xlane.xlu0 %453
        %v455 = vsel %vm300, %v435, 0.0
        %456 = vadd.xlane.f32.xlu0 %v455
        %v457 = vpop.xlane.xlu0 %456
        %v458 = vsel %vm300, %v436, 0.0
        %459 = vadd.xlane.f32.xlu0 %v458
        %v460 = vpop.xlane.xlu0 %459
        %v461 = vsub.f32 %v389, %v439
        %v462 = vsub.f32 %v390, %v442
        %v463 = vsub.f32 %v391, %v445
        %v464 = vsub.f32 %v392, %v448
        %v465 = vsub.f32 %v393, %v451
        %v466 = vsub.f32 %v394, %v454
        %v467 = vsub.f32 %v395, %v457
        %v468 = vsub.f32 %v396, %v460
        %v469 = vcvt.s32.f32 %v244
        %v470 = vcvt.s32.f32 %v245
        %v471 = vcvt.s32.f32 %v246
        %v472 = vcvt.s32.f32 %v247
        %v473 = vcvt.s32.f32 %v248
        %v474 = vcvt.s32.f32 %v249
        %v475 = vcvt.s32.f32 %v250
        %v476 = vcvt.s32.f32 %v251
        %v477 = vmul.f32 %v461, %v469
        %v478 = vmul.f32 %v462, %v470
        %v479 = vmul.f32 %v463, %v471
        %v480 = vmul.f32 %v464, %v472
        %v481 = vmul.f32 %v465, %v473
        %v482 = vmul.f32 %v466, %v474
        %v483 = vmul.f32 %v467, %v475
        %v484 = vmul.f32 %v468, %v476
        %vm485 = vcmask 23568
        %v486 = vsel %vm485, %v477, 0.0
        %v487 = vsel %vm485, %v478, 0.0
        %v488 = vadd.f32 %v486, %v487
        %v489 = vsel %vm485, %v479, 0.0
        %v490 = vadd.f32 %v488, %v489
        %v491 = vsel %vm485, %v480, 0.0
        %v492 = vadd.f32 %v490, %v491
        %v493 = vsel %vm485, %v481, 0.0
        %v494 = vadd.f32 %v492, %v493
        %v495 = vsel %vm485, %v482, 0.0
        %v496 = vadd.f32 %v494, %v495
        %v497 = vsel %vm485, %v483, 0.0
        %v498 = vadd.f32 %v496, %v497
        %v499 = vsel %vm485, %v484, 0.0
        %v500 = vadd.f32 %v498, %v499
        %v501 = vrot.slane %v500, 4
        %v502 = vadd.f32 %v500, %v501
        %v503 = vrot.slane %v502, 2
        %v504 = vadd.f32 %v502, %v503
        %v505 = vrot.slane %v504, 1
        %v506 = vadd.f32 %v504, %v505
        %508 = vset.pattern.permute.xlu0 2
        %509 = vperm.xlu0 %508, %v506
        %v510 = vpop.permute.xlu0 %509
        %512 = vst [vmem:[%s165] sm:$0xff] %v510
        %s513 = sand.u32 %s76, 1
        %s514 = scalar_lea.sflag [#allocation3], %s513
        %s515 = sand.u32 %s76, 1
        %s516 = smul.addr %s515, 8
        %s517 = scalar_lea.vmem [#allocation2], %s516
        // Predicated region
        $region29: #{tpu_custom_call.1} parent=27 // pred_check
          %p518 = pneg %p86
        $region30: #{tpu_custom_call.1} parent=27 // pred_check_branch
          %520 = sbr.rel (%p518) target = $region32
        $region31: #{tpu_custom_call.1} parent=27 // pred_region
          %s522 = ssub.s32 128, 128
          %523 = vsyncadd %s514, %s522
          %s524 = smul.addr %s16, 128
          %s525 = scalar_lea.hbm %s2, %s524
          %s527 = sshll.u32 %s517, 4
          %s528 = int_to_ptr.vmem [resolvable:$true] %s527
          %530 = dma.vmem_to_hbm [thread:$0]  %s528, 128, %s525, %s514
        $region32: #{tpu_custom_call.1} parent=27 // pred_fallthru
          _
      $region28: #{tpu_custom_call.1} parent=5 // pred_fallthru
        _
      %p531 = scmp.le.s32.totalorder 2, %s11
      // Predicated region
      $region33: #{tpu_custom_call.1} parent=5 // pred_check
        %p532 = pneg %p531
      $region34: #{tpu_custom_call.1} parent=5 // pred_check_branch
        %534 = sbr.rel (%p532) target = $region36
      $region35: #{tpu_custom_call.1} parent=5 // pred_region
        %s535 = ssub.s32 %s11, 2
        // Predicated region
        $region37: #{tpu_custom_call.1} parent=35 // pred_check
          %p536 = pneg %p92
        $region38: #{tpu_custom_call.1} parent=35 // pred_check_branch
          %538 = sbr.rel (%p536) target = $region40
        $region39: #{tpu_custom_call.1} parent=35 // pred_region
          %s539 = sand.u32 %s77, 1
          %s540 = scalar_lea.sflag [#allocation3], %s539
          %s541 = sand.u32 %s77, 1
          %s542 = smul.addr %s541, 8
          %s543 = scalar_lea.vmem [#allocation2], %s542
          %544 = dma.done %s540, 128
        $region40: #{tpu_custom_call.1} parent=35 // pred_fallthru
          _
      $region36: #{tpu_custom_call.1} parent=5 // pred_fallthru
        _
    $region6: #{tpu_custom_call.1} parent=1 // loop_footer
      %s15 = sadd.s32 1, %s11
    $region7: #{tpu_custom_call.1} parent=1 // loop_footer_branch
      %10 = sbr.rel target = $region3
    $region8: #{tpu_custom_call.1} parent=1 // loop_exit
      _
    %545 = vsyncpa [#allocation3], 1
    %s546 = scalar_lea.sflag [#allocation3], 1
    %547 = vsyncpa %s546, 1

</llo_original>
